<compile_context>
chip_gen: v7x
topology: tpu7x:2x2x1
jax: 0.10.0
libtpu: 0.0.40
codegen_flags: <defaults>
</compile_context>

<pallas_src>
import jax
import jax.numpy as jnp
from jax.experimental import pallas as pl
from jax.experimental.pallas import tpu as pltpu


def _cdiv(a, b):
    return -(-a // b)


def _round_up(x, m):
    return (x + m - 1) // m * m


def nce_kernel(x_ref,
               w0_ref, b0_ref,
               w1_ref, b1_ref,
               w2_ref, b2_ref,
               w3_ref, b3c_ref,
               o_ref):
    """Fused MLP: (Linear->LeakyReLU(0.2)) x3 -> width-1 Linear, log_p = -(f + c).

    Matmul-operand dtype = w0_ref.dtype (bf16 on all chips is fine).
    Epilogue dtype        = b0_ref.dtype (bf16 on v6e/v7x, f32 on v5e).
    """
    mm = w0_ref.dtype          # MXU operand dtype
    ep = b0_ref.dtype          # bias-add / LeakyReLU dtype

    h = x_ref[...].astype(mm)  # in-kernel cast of the tile (no wrapper HBM pass)

    h = jnp.dot(h, w0_ref[...], preferred_element_type=ep) + b0_ref[...]
    h = jnp.maximum(h, 0.2 * h)                      # LeakyReLU(0.2) = max(h, 0.2h)

    h = jnp.dot(h.astype(mm), w1_ref[...], preferred_element_type=ep) + b1_ref[...]
    h = jnp.maximum(h, 0.2 * h)

    h = jnp.dot(h.astype(mm), w2_ref[...], preferred_element_type=ep) + b2_ref[...]
    h = jnp.maximum(h, 0.2 * h)

    # Final [H] -> [1] projection on the VPU (mul) + XLU (lane reduce), f32;
    # c is already folded into b3c:  f + c = sum(h * w3_row, -1) + (b3 + c).
    f = jnp.sum(h.astype(jnp.float32) * w3_ref[...], axis=-1, keepdims=True)
    o_ref[...] = (-(f + b3c_ref[...])).astype(o_ref.dtype)


def _choose_block(n, block_cap, align=128):
    """Pick a batch tile: large, 128-aligned, and giving >=2 grid steps when possible."""
    n_up = _round_up(n, align)
    cap = max(align, _round_up(min(block_cap, n_up), align))
    nb = _cdiv(n, cap)
    if nb == 1 and n > 2 * align:
        nb = 2                                   # >=2 steps: v7x megacore + pipelining
    block_n = max(align, _round_up(_cdiv(n, nb), align))
    grid_n = _cdiv(n, block_n)
    return block_n, grid_n


def _tile_bytes(rows, cols, itemsize):
    """VMEM footprint of a (rows, cols) tile after (8, 128) layout padding."""
    return _round_up(max(rows, 1), 8) * _round_up(max(cols, 1), 128) * itemsize


def nce_forward(x, params, *, block_n=None,
                compute_dtype=jnp.bfloat16, epilogue_dtype=None):
    """params = (w0,b0,w1,b1,w2,b2,w3,b3,c); returns log_p of shape [N, 1].

    compute_dtype : MXU operand dtype (bf16 recommended on all TPU generations).
    epilogue_dtype: bias-add/LeakyReLU dtype; None -> same as compute_dtype.
                    Pass jnp.float32 on v5e (no bf16 VPU there).
    """
    w0, b0, w1, b1, w2, b2, w3, b3, c = params
    n, dim = x.shape
    hidden = w0.shape[1]

    mm_dt = jnp.dtype(compute_dtype)
    ep_dt = mm_dt if epilogue_dtype is None else jnp.dtype(epilogue_dtype)

    if block_n is None:
        block_n = 8192 if n >= 65536 else 4096
    block_n, grid_n = _choose_block(n, block_n)

    # Grid-invariant operands (DMA'd once, revisited every step).
    w0c = w0.astype(mm_dt)
    w1c = w1.astype(mm_dt)
    w2c = w2.astype(mm_dt)
    b0r = b0.reshape(1, hidden).astype(ep_dt)
    b1r = b1.reshape(1, hidden).astype(ep_dt)
    b2r = b2.reshape(1, hidden).astype(ep_dt)
    w3r = w3.reshape(1, hidden).astype(jnp.float32)                 # VPU row operand
    b3c = (b3.reshape(1, 1) + c.reshape(1, 1)).astype(jnp.float32)  # fold c into bias

    # Scoped-VMEM budget from lane-padded buffer sizes (x tile pads dim -> 128
    # lanes, out tile pads 1 -> 128 lanes), double-buffered, plus a conservative
    # allowance for f32 intermediates; 1.5x margin, clamped to [16 MiB, 48 MiB]
    # (never the full 64 MiB physical VMEM of a v7x TensorCore).
    x_bytes = _tile_bytes(block_n, dim, jnp.dtype(x.dtype).itemsize)
    out_bytes = _tile_bytes(block_n, 1, 4)
    w_bytes = (_tile_bytes(dim, hidden, mm_dt.itemsize)
               + 2 * _tile_bytes(hidden, hidden, mm_dt.itemsize)
               + 3 * _tile_bytes(1, hidden, ep_dt.itemsize)
               + _tile_bytes(1, hidden, 4) + _tile_bytes(1, 1, 4))
    inter_bytes = 4 * _tile_bytes(block_n, hidden, 4)
    est = 2 * (x_bytes + out_bytes + w_bytes) + inter_bytes
    vmem_limit = int(min(max(int(est * 1.5), 16 * 1024 * 1024), 48 * 1024 * 1024))

    const = lambda shape: pl.BlockSpec(shape, lambda i: (0, 0))

    out = pl.pallas_call(
        nce_kernel,
        out_shape=jax.ShapeDtypeStruct((n, 1), jnp.float32),
        grid_spec=pltpu.PrefetchScalarGridSpec(
            num_scalar_prefetch=0,
            grid=(grid_n,),
            in_specs=[
                pl.BlockSpec((block_n, dim), lambda i: (i, 0)),   # x tile (pipelined, ragged last block)
                const((dim, hidden)), const((1, hidden)),         # input layer
                const((hidden, hidden)), const((1, hidden)),      # hidden layer 1
                const((hidden, hidden)), const((1, hidden)),      # hidden layer 2
                const((1, hidden)), const((1, 1)),                # output layer (+ folded c)
            ],
            out_specs=pl.BlockSpec((block_n, 1), lambda i: (i, 0)),
        ),
        compiler_params=pltpu.CompilerParams(
            dimension_semantics=("parallel",),
            vmem_limit_bytes=vmem_limit),
    )(x, w0c, b0r, w1c, b1r, w2c, b2r, w3r, b3c)

    return out


def init_params(key, dim, hidden_dim=128, num_layers=2):
    """Deterministic PyTorch-style (uniform +-1/sqrt(fan_in)) init; weights [in, out]."""
    assert num_layers == 2  # kernel is specialized to the default num_layers=2
    keys = jax.random.split(key, 8)

    def linear(kw, kb, fan_in, fan_out):
        bound = 1.0 / jnp.sqrt(fan_in)
        w = jax.random.uniform(kw, (fan_in, fan_out), jnp.float32, -bound, bound)
        b = jax.random.uniform(kb, (fan_out,), jnp.float32, -bound, bound)
        return w, b

    w0, b0 = linear(keys[0], keys[1], dim, hidden_dim)
    w1, b1 = linear(keys[2], keys[3], hidden_dim, hidden_dim)
    w2, b2 = linear(keys[4], keys[5], hidden_dim, hidden_dim)
    w3, b3 = linear(keys[6], keys[7], hidden_dim, 1)
    c = jnp.array([1.0], dtype=jnp.float32)   # nn.Parameter(torch.tensor([1.0]))
    return (w0, b0, w1, b1, w2, b2, w3, b3, c)


def nce_forward_ref(x, params, compute_dtype=jnp.float32, epilogue_dtype=None):
    """Pure-JAX reference mirroring the kernel numerics (operand casts + epilogue dtype)."""
    w0, b0, w1, b1, w2, b2, w3, b3, c = params
    mm = jnp.dtype(compute_dtype)
    ep = mm if epilogue_dtype is None else jnp.dtype(epilogue_dtype)
    hi = jax.lax.Precision.HIGHEST

    h = x.astype(mm)
    for w, b in ((w0, b0), (w1, b1), (w2, b2)):
        h = jnp.dot(h.astype(mm), w.astype(mm),
                    preferred_element_type=ep, precision=hi) + b.astype(ep)
        h = jnp.maximum(h, 0.2 * h)
    f = jnp.dot(h.astype(jnp.float32), w3.astype(jnp.float32),
                preferred_element_type=jnp.float32, precision=hi) + b3
    return (-f - c[0]).astype(jnp.float32)


if __name__ == "__main__":
    key = jax.random.PRNGKey(0)
    k_param, k_x1, k_x2, k_x3 = jax.random.split(key, 4)

    # Small shapes consistent with NCE(noise, dim=16, hidden_dim=32, num_layers=2).
    N, DIM, HIDDEN = 8, 16, 32
    params = init_params(k_param, DIM, hidden_dim=HIDDEN, num_layers=2)

    # 1) Full-precision path (v5e-style f32 epilogue): tight check vs reference.
    x = jax.random.normal(k_x1, (N, DIM), dtype=jnp.float32)
    out_f32 = nce_forward(x, params, compute_dtype=jnp.float32)
    jax.block_until_ready(out_f32)
    ref_f32 = nce_forward_ref(x, params, compute_dtype=jnp.float32)
    assert out_f32.shape == (N, 1)
    assert jnp.allclose(out_f32, ref_f32, atol=1e-3, rtol=1e-3), "f32 mismatch vs reference"

    # 2) Default bf16 path, small forced tile -> multi-step grid + ragged last block.
    N2 = 200
    x2 = jax.random.normal(k_x2, (N2, DIM), dtype=jnp.float32)
    out_bf = nce_forward(x2, params, block_n=64)          # -> 2 tiles of 128 rows (last ragged)
    jax.block_until_ready(out_bf)
    ref_bf = nce_forward_ref(x2, params, compute_dtype=jnp.bfloat16)
    assert out_bf.shape == (N2, 1)
    assert jnp.allclose(out_bf, ref_bf, atol=2.5e-2, rtol=2.5e-2), "bf16 mismatch vs reference"

    # 3) Default tiling path: auto block selection keeps >=2 grid steps (v7x megacore).
    N3 = 1000
    x3 = jax.random.normal(k_x3, (N3, DIM), dtype=jnp.float32)
    out_def = nce_forward(x3, params)                      # block_n=512, grid=2, ragged tail
    jax.block_until_ready(out_def)
    ref_def = nce_forward_ref(x3, params, compute_dtype=jnp.bfloat16)
    assert out_def.shape == (N3, 1)
    assert jnp.allclose(out_def, ref_def, atol=2.5e-2, rtol=2.5e-2), "default-path mismatch"

    # TODO(synk): classify/log_density/optimize depend on self.noise (torch.distributions
    # log_prob/sample) and an Adam training loop; only the forward pass is a kernel.
    print("KERNEL_OK")
</pallas_src>

<mosaic_0001>
module attributes {stable_mosaic.version = 11 : i64} {
  func.func @nce_kernel(%arg0: i32, %arg1: memref<128x16xf32, #tpu.memory_space<vmem>>, %arg2: memref<16x32xf32, #tpu.memory_space<vmem>>, %arg3: memref<1x32xf32, #tpu.memory_space<vmem>>, %arg4: memref<32x32xf32, #tpu.memory_space<vmem>>, %arg5: memref<1x32xf32, #tpu.memory_space<vmem>>, %arg6: memref<32x32xf32, #tpu.memory_space<vmem>>, %arg7: memref<1x32xf32, #tpu.memory_space<vmem>>, %arg8: memref<1x32xf32, #tpu.memory_space<vmem>>, %arg9: memref<1x1xf32, #tpu.memory_space<vmem>>, %arg10: memref<128x1xf32, #tpu.memory_space<vmem>>) attributes {dimension_semantics = [#tpu.dimension_semantics<parallel>], iteration_bounds = array<i64: 1>, scalar_prefetch = 0 : i64, scratch_operands = 0 : i64, tpu.core_type = #tpu.core_type<tc>, window_params = [{transform_indices = @transform_0, window_bounds = array<i64: 128, 16>}, {pipeline_mode = #tpu.pipeline_mode<synchronous>, transform_indices = @transform_1, window_bounds = array<i64: 16, 32>}, {pipeline_mode = #tpu.pipeline_mode<synchronous>, transform_indices = @transform_2, window_bounds = array<i64: 1, 32>}, {pipeline_mode = #tpu.pipeline_mode<synchronous>, transform_indices = @transform_3, window_bounds = array<i64: 32, 32>}, {pipeline_mode = #tpu.pipeline_mode<synchronous>, transform_indices = @transform_4, window_bounds = array<i64: 1, 32>}, {pipeline_mode = #tpu.pipeline_mode<synchronous>, transform_indices = @transform_5, window_bounds = array<i64: 32, 32>}, {pipeline_mode = #tpu.pipeline_mode<synchronous>, transform_indices = @transform_6, window_bounds = array<i64: 1, 32>}, {pipeline_mode = #tpu.pipeline_mode<synchronous>, transform_indices = @transform_7, window_bounds = array<i64: 1, 32>}, {pipeline_mode = #tpu.pipeline_mode<synchronous>, transform_indices = @transform_8, window_bounds = array<i64: 1, 1>}, {transform_indices = @transform_9, window_bounds = array<i64: 128, 1>}]} {
    %c0 = arith.constant 0 : index
    %c0_0 = arith.constant 0 : index
    %0 = vector.load %arg1[%c0, %c0_0] : memref<128x16xf32, #tpu.memory_space<vmem>>, vector<128x16xf32>
    %c0_1 = arith.constant 0 : index
    %c0_2 = arith.constant 0 : index
    %1 = vector.load %arg2[%c0_1, %c0_2] : memref<16x32xf32, #tpu.memory_space<vmem>>, vector<16x32xf32>
    %cst = arith.constant dense<0.000000e+00> : vector<128x32xf32>
    %2 = tpu.matmul %0, %1, %cst {dimension_numbers = #tpu.dot_dimension_numbers<[1], [0], [0], [1], [0, 0, 1, 1], [], []>} : vector<128x16xf32>, vector<16x32xf32>, vector<128x32xf32> -> vector<128x32xf32>
    %c0_3 = arith.constant 0 : index
    %c0_4 = arith.constant 0 : index
    %3 = vector.load %arg3[%c0_3, %c0_4] : memref<1x32xf32, #tpu.memory_space<vmem>>, vector<1x32xf32>
    %4 = vector.broadcast %3 : vector<1x32xf32> to vector<128x32xf32>
    %5 = arith.addf %2, %4 : vector<128x32xf32>
    %cst_5 = arith.constant 2.000000e-01 : f32
    %6 = vector.broadcast %cst_5 : f32 to vector<128x32xf32>
    %7 = arith.mulf %6, %5 : vector<128x32xf32>
    %8 = arith.maximumf %5, %7 : vector<128x32xf32>
    %c0_6 = arith.constant 0 : index
    %c0_7 = arith.constant 0 : index
    %9 = vector.load %arg4[%c0_6, %c0_7] : memref<32x32xf32, #tpu.memory_space<vmem>>, vector<32x32xf32>
    %cst_8 = arith.constant dense<0.000000e+00> : vector<128x32xf32>
    %10 = tpu.matmul %8, %9, %cst_8 {dimension_numbers = #tpu.dot_dimension_numbers<[1], [0], [0], [1], [0, 0, 1, 1], [], []>} : vector<128x32xf32>, vector<32x32xf32>, vector<128x32xf32> -> vector<128x32xf32>
    %c0_9 = arith.constant 0 : index
    %c0_10 = arith.constant 0 : index
    %11 = vector.load %arg5[%c0_9, %c0_10] : memref<1x32xf32, #tpu.memory_space<vmem>>, vector<1x32xf32>
    %12 = vector.broadcast %11 : vector<1x32xf32> to vector<128x32xf32>
    %13 = arith.addf %10, %12 : vector<128x32xf32>
    %cst_11 = arith.constant 2.000000e-01 : f32
    %14 = vector.broadcast %cst_11 : f32 to vector<128x32xf32>
    %15 = arith.mulf %14, %13 : vector<128x32xf32>
    %16 = arith.maximumf %13, %15 : vector<128x32xf32>
    %c0_12 = arith.constant 0 : index
    %c0_13 = arith.constant 0 : index
    %17 = vector.load %arg6[%c0_12, %c0_13] : memref<32x32xf32, #tpu.memory_space<vmem>>, vector<32x32xf32>
    %cst_14 = arith.constant dense<0.000000e+00> : vector<128x32xf32>
    %18 = tpu.matmul %16, %17, %cst_14 {dimension_numbers = #tpu.dot_dimension_numbers<[1], [0], [0], [1], [0, 0, 1, 1], [], []>} : vector<128x32xf32>, vector<32x32xf32>, vector<128x32xf32> -> vector<128x32xf32>
    %c0_15 = arith.constant 0 : index
    %c0_16 = arith.constant 0 : index
    %19 = vector.load %arg7[%c0_15, %c0_16] : memref<1x32xf32, #tpu.memory_space<vmem>>, vector<1x32xf32>
    %20 = vector.broadcast %19 : vector<1x32xf32> to vector<128x32xf32>
    %21 = arith.addf %18, %20 : vector<128x32xf32>
    %cst_17 = arith.constant 2.000000e-01 : f32
    %22 = vector.broadcast %cst_17 : f32 to vector<128x32xf32>
    %23 = arith.mulf %22, %21 : vector<128x32xf32>
    %24 = arith.maximumf %21, %23 : vector<128x32xf32>
    %c0_18 = arith.constant 0 : index
    %c0_19 = arith.constant 0 : index
    %25 = vector.load %arg8[%c0_18, %c0_19] : memref<1x32xf32, #tpu.memory_space<vmem>>, vector<1x32xf32>
    %26 = vector.broadcast %25 : vector<1x32xf32> to vector<128x32xf32>
    %27 = arith.mulf %24, %26 : vector<128x32xf32>
    %cst_20 = arith.constant dense<0.000000e+00> : vector<128xf32>
    %28 = vector.multi_reduction <add>, %27, %cst_20 [1] : vector<128x32xf32> to vector<128xf32>
    %29 = vector.shape_cast %28 : vector<128xf32> to vector<128x1xf32>
    %c0_21 = arith.constant 0 : index
    %c0_22 = arith.constant 0 : index
    %30 = vector.load %arg9[%c0_21, %c0_22] : memref<1x1xf32, #tpu.memory_space<vmem>>, vector<1x1xf32>
    %31 = vector.broadcast %30 : vector<1x1xf32> to vector<128x1xf32>
    %32 = arith.addf %29, %31 : vector<128x1xf32>
    %cst_23 = arith.constant 0.000000e+00 : f32
    %33 = vector.broadcast %cst_23 : f32 to vector<128x1xf32>
    %34 = arith.subf %33, %32 : vector<128x1xf32>
    %c0_24 = arith.constant 0 : index
    %c0_25 = arith.constant 0 : index
    %35 = vector.load %arg10[%c0_24, %c0_25] : memref<128x1xf32, #tpu.memory_space<vmem>>, vector<128x1xf32>
    tpu.vector_store %arg10[%c0_24, %c0_25], %34 {strides = array<i32>} : memref<128x1xf32, #tpu.memory_space<vmem>>, vector<128x1xf32>,
    return
  }
  func.func @transform_0(%arg0: i32) -> (i32, i32) {
    %c0_i32 = arith.constant 0 : i32
    %c0_i32_0 = arith.constant 0 : i32
    return %arg0, %c0_i32 : i32, i32
  }
  func.func @transform_1(%arg0: i32) -> (i32, i32) {
    %c0_i32 = arith.constant 0 : i32
    %c0_i32_0 = arith.constant 0 : i32
    %c0_i32_1 = arith.constant 0 : i32
    return %c0_i32, %c0_i32_0 : i32, i32
  }
  func.func @transform_2(%arg0: i32) -> (i32, i32) {
    %c0_i32 = arith.constant 0 : i32
    %c0_i32_0 = arith.constant 0 : i32
    %c0_i32_1 = arith.constant 0 : i32
    return %c0_i32, %c0_i32_0 : i32, i32
  }
  func.func @transform_3(%arg0: i32) -> (i32, i32) {
    %c0_i32 = arith.constant 0 : i32
    %c0_i32_0 = arith.constant 0 : i32
    %c0_i32_1 = arith.constant 0 : i32
    return %c0_i32, %c0_i32_0 : i32, i32
  }
  func.func @transform_4(%arg0: i32) -> (i32, i32) {
    %c0_i32 = arith.constant 0 : i32
    %c0_i32_0 = arith.constant 0 : i32
    %c0_i32_1 = arith.constant 0 : i32
    return %c0_i32, %c0_i32_0 : i32, i32
  }
  func.func @transform_5(%arg0: i32) -> (i32, i32) {
    %c0_i32 = arith.constant 0 : i32
    %c0_i32_0 = arith.constant 0 : i32
    %c0_i32_1 = arith.constant 0 : i32
    return %c0_i32, %c0_i32_0 : i32, i32
  }
  func.func @transform_6(%arg0: i32) -> (i32, i32) {
    %c0_i32 = arith.constant 0 : i32
    %c0_i32_0 = arith.constant 0 : i32
    %c0_i32_1 = arith.constant 0 : i32
    return %c0_i32, %c0_i32_0 : i32, i32
  }
  func.func @transform_7(%arg0: i32) -> (i32, i32) {
    %c0_i32 = arith.constant 0 : i32
    %c0_i32_0 = arith.constant 0 : i32
    %c0_i32_1 = arith.constant 0 : i32
    return %c0_i32, %c0_i32_0 : i32, i32
  }
  func.func @transform_8(%arg0: i32) -> (i32, i32) {
    %c0_i32 = arith.constant 0 : i32
    %c0_i32_0 = arith.constant 0 : i32
    %c0_i32_1 = arith.constant 0 : i32
    return %c0_i32, %c0_i32_0 : i32, i32
  }
  func.func @transform_9(%arg0: i32) -> (i32, i32) {
    %c0_i32 = arith.constant 0 : i32
    %c0_i32_0 = arith.constant 0 : i32
    return %arg0, %c0_i32 : i32, i32
  }
}

</mosaic_0001>

<llo_original>
// kernel: tpu_custom_call.1
$region0: #{tpu_custom_call.1}
  #allocation0 [shape = 'u32[]', space=smem, size = 0x4, offset = 0x4, fixed_abs, tag = 'smem constant byte address 0x4 - core index']
  #allocation1 [shape = 'u32[144,128]{1,0:T(1,128)}', space=vmem, size = 0x12000, scoped, tag = 'internal scratch']
  #allocation2 [shape = 'f32[1,1]{1,0:T(1,128)S(1)}', space=vmem, size = 0x200, scoped, tag = 'scoped memory for tpu_custom_call.1']
  %s0 = inlined_call_operand.hbm [shape: f32[8,16], index: 0, kind: input, shape index: {}]
  %s1 = inlined_call_operand.hbm [shape: f32[16,32], index: 1, kind: input, shape index: {}]
  %s2 = inlined_call_operand.vmem [shape: f32[1,32], index: 2, kind: input, shape index: {}]
  %s3 = inlined_call_operand.hbm [shape: f32[32,32], index: 3, kind: input, shape index: {}]
  %s4 = inlined_call_operand.vmem [shape: f32[1,32], index: 4, kind: input, shape index: {}]
  %s5 = inlined_call_operand.hbm [shape: f32[32,32], index: 5, kind: input, shape index: {}]
  %s6 = inlined_call_operand.vmem [shape: f32[1,32], index: 6, kind: input, shape index: {}]
  %s7 = inlined_call_operand.vmem [shape: f32[1,32], index: 7, kind: input, shape index: {}]
  %s8 = inlined_call_operand.<no memory space> [shape: f32[1,1], index: 8, kind: input, shape index: {}]
  %s9 = inlined_call_operand.vmem [shape: f32[8,1], index: 9, kind: output, shape index: {}]
  %s10 = sld [smem:[#allocation0]]
  $region96: #{tpu_custom_call.1} parent=0
    _
  %s12 = ssub.s32 1, %s10
  %s13 = scalar_select 0, %s12, %s10
  %v14 = vstv %s8
  %15 = vst [vmem:[#allocation2] sm:$0x1] %v14
  $region1: #{tpu_custom_call.1} parent=0
    #allocation3 [shape = 'u8[65536]{0}', space=vmem, size = 0x10000, scoped, tag = 'input window, operand 0, single buffered']
    #allocation4 [shape = 's32[1]{0}', space=sflag, size = 0x4, scoped, tag = 'scoped memory for tpu_custom_call.1']
    #allocation5 [shape = 'u8[8192]{0}', space=vmem, size = 0x2000, scoped, tag = 'input window, operand 1, single buffered']
    #allocation6 [shape = 's32[1]{0}', space=sflag, size = 0x4, scoped, tag = 'scoped memory for tpu_custom_call.1']
    #allocation7 [shape = 'u8[16384]{0}', space=vmem, size = 0x4000, scoped, tag = 'input window, operand 3, single buffered']
    #allocation8 [shape = 'u8[16384]{0}', space=vmem, size = 0x4000, scoped, tag = 'input window, operand 5, single buffered']
    #allocation9 [shape = 's32[1]{0}', space=sflag, size = 0x4, scoped, tag = 'scoped memory for tpu_custom_call.1']
    #allocation10 [shape = 'u8[65536]{0}', space=vmem, size = 0x10000, scoped, tag = 'output window, operand 0, single buffered']
    %16 = vsyncpa [#allocation4], 0
    %17 = vsyncpa [#allocation6], 0
    %18 = vsyncpa [#allocation9], 0
    // Predicated region
    $region2: #{tpu_custom_call.1} parent=1 // pred_check
      _
    $region3: #{tpu_custom_call.1} parent=1 // pred_check_branch
      %20 = sbr.rel (0) target = $region5
    $region4: #{tpu_custom_call.1} parent=1 // pred_region
      %s22 = ssub.s32 2048, 128
      %23 = vsyncadd [#allocation4], %s22
      %s24 = sshll.u32 [#allocation3], 4
      %s25 = int_to_ptr.vmem [resolvable:$true] %s24
      %30 = dma.hbm_to_vmem [thread:$0]  %s0, 128, %s25, [#allocation4], 128, 128, 8
    $region5: #{tpu_custom_call.1} parent=1 // pred_fallthru
      _
    // Predicated region
    $region6: #{tpu_custom_call.1} parent=1 // pred_check
      _
    $region7: #{tpu_custom_call.1} parent=1 // pred_check_branch
      %32 = sbr.rel (0) target = $region9
    $region8: #{tpu_custom_call.1} parent=1 // pred_region
      %s34 = ssub.s32 256, 256
      %35 = vsyncadd [#allocation6], %s34
      %s36 = sshll.u32 [#allocation5], 4
      %s37 = int_to_ptr.vmem [resolvable:$true] %s36
      %42 = dma.hbm_to_vmem [thread:$0]  %s1, 256, %s37, [#allocation6], 128, 128, 8
    $region9: #{tpu_custom_call.1} parent=1 // pred_fallthru
      _
    // Predicated region
    $region10: #{tpu_custom_call.1} parent=1 // pred_check
      _
    $region11: #{tpu_custom_call.1} parent=1 // pred_check_branch
      %44 = sbr.rel (0) target = $region13
    $region12: #{tpu_custom_call.1} parent=1 // pred_region
      _
    $region13: #{tpu_custom_call.1} parent=1 // pred_fallthru
      _
    // Predicated region
    $region14: #{tpu_custom_call.1} parent=1 // pred_check
      _
    $region15: #{tpu_custom_call.1} parent=1 // pred_check_branch
      %46 = sbr.rel (0) target = $region17
    $region16: #{tpu_custom_call.1} parent=1 // pred_region
      %s48 = ssub.s32 512, 512
      %49 = vsyncadd [#allocation6], %s48
      %s50 = sshll.u32 [#allocation7], 4
      %s51 = int_to_ptr.vmem [resolvable:$true] %s50
      %56 = dma.hbm_to_vmem [thread:$0]  %s3, 512, %s51, [#allocation6], 128, 128, 8
    $region17: #{tpu_custom_call.1} parent=1 // pred_fallthru
      _
    // Predicated region
    $region18: #{tpu_custom_call.1} parent=1 // pred_check
      _
    $region19: #{tpu_custom_call.1} parent=1 // pred_check_branch
      %58 = sbr.rel (0) target = $region21
    $region20: #{tpu_custom_call.1} parent=1 // pred_region
      _
    $region21: #{tpu_custom_call.1} parent=1 // pred_fallthru
      _
    // Predicated region
    $region22: #{tpu_custom_call.1} parent=1 // pred_check
      _
    $region23: #{tpu_custom_call.1} parent=1 // pred_check_branch
      %60 = sbr.rel (0) target = $region25
    $region24: #{tpu_custom_call.1} parent=1 // pred_region
      %s62 = ssub.s32 512, 512
      %63 = vsyncadd [#allocation9], %s62
      %s64 = sshll.u32 [#allocation8], 4
      %s65 = int_to_ptr.vmem [resolvable:$true] %s64
      %70 = dma.hbm_to_vmem [thread:$0]  %s5, 512, %s65, [#allocation9], 128, 128, 8
    $region25: #{tpu_custom_call.1} parent=1 // pred_fallthru
      _
    // Predicated region
    $region26: #{tpu_custom_call.1} parent=1 // pred_check
      _
    $region27: #{tpu_custom_call.1} parent=1 // pred_check_branch
      %72 = sbr.rel (0) target = $region29
    $region28: #{tpu_custom_call.1} parent=1 // pred_region
      _
    $region29: #{tpu_custom_call.1} parent=1 // pred_fallthru
      _
    // Predicated region
    $region30: #{tpu_custom_call.1} parent=1 // pred_check
      _
    $region31: #{tpu_custom_call.1} parent=1 // pred_check_branch
      %74 = sbr.rel (0) target = $region33
    $region32: #{tpu_custom_call.1} parent=1 // pred_region
      _
    $region33: #{tpu_custom_call.1} parent=1 // pred_fallthru
      _
    // Predicated region
    $region34: #{tpu_custom_call.1} parent=1 // pred_check
      _
    $region35: #{tpu_custom_call.1} parent=1 // pred_check_branch
      %76 = sbr.rel (0) target = $region37
    $region36: #{tpu_custom_call.1} parent=1 // pred_region
      _
    $region37: #{tpu_custom_call.1} parent=1 // pred_fallthru
      _
    // Predicated region
    $region38: #{tpu_custom_call.1} parent=1 // pred_check
      _
    $region39: #{tpu_custom_call.1} parent=1 // pred_check_branch
      %78 = sbr.rel (0) target = $region41
    $region40: #{tpu_custom_call.1} parent=1 // pred_region
      %79 = dma.done [#allocation4], 2048
    $region41: #{tpu_custom_call.1} parent=1 // pred_fallthru
      _
    // Predicated region
    $region42: #{tpu_custom_call.1} parent=1 // pred_check
      _
    $region43: #{tpu_custom_call.1} parent=1 // pred_check_branch
      %81 = sbr.rel (0) target = $region45
    $region44: #{tpu_custom_call.1} parent=1 // pred_region
      %82 = dma.done [#allocation6], 256
    $region45: #{tpu_custom_call.1} parent=1 // pred_fallthru
      _
    // Predicated region
    $region46: #{tpu_custom_call.1} parent=1 // pred_check
      _
    $region47: #{tpu_custom_call.1} parent=1 // pred_check_branch
      %84 = sbr.rel (0) target = $region49
    $region48: #{tpu_custom_call.1} parent=1 // pred_region
      %85 = dma.done [#allocation6], 512
    $region49: #{tpu_custom_call.1} parent=1 // pred_fallthru
      _
    // Predicated region
    $region50: #{tpu_custom_call.1} parent=1 // pred_check
      _
    $region51: #{tpu_custom_call.1} parent=1 // pred_check_branch
      %87 = sbr.rel (0) target = $region53
    $region52: #{tpu_custom_call.1} parent=1 // pred_region
      %88 = dma.done [#allocation9], 512
    $region53: #{tpu_custom_call.1} parent=1 // pred_fallthru
      _
    %v89 = vld [vmem:[#allocation3] sm:$0xff]
    %v90 = vld [vmem:[#allocation3 + $0x8] sm:$0xff]
    %v91 = vld [vmem:[#allocation3 + $0x10] sm:$0xff]
    %v92 = vld [vmem:[#allocation3 + $0x18] sm:$0xff]
    %v93 = vld [vmem:[#allocation3 + $0x20] sm:$0xff]
    %v94 = vld [vmem:[#allocation3 + $0x28] sm:$0xff]
    %v95 = vld [vmem:[#allocation3 + $0x30] sm:$0xff]
    %v96 = vld [vmem:[#allocation3 + $0x38] sm:$0xff]
    %v97 = vld [vmem:[#allocation3 + $0x40] sm:$0xff]
    %v98 = vld [vmem:[#allocation3 + $0x48] sm:$0xff]
    %v99 = vld [vmem:[#allocation3 + $0x50] sm:$0xff]
    %v100 = vld [vmem:[#allocation3 + $0x58] sm:$0xff]
    %v101 = vld [vmem:[#allocation3 + $0x60] sm:$0xff]
    %v102 = vld [vmem:[#allocation3 + $0x68] sm:$0xff]
    %v103 = vld [vmem:[#allocation3 + $0x70] sm:$0xff]
    %v104 = vld [vmem:[#allocation3 + $0x78] sm:$0xff]
    %v105 = vld [vmem:[#allocation5] sm:$0xff]
    %v106 = vld [vmem:[#allocation5 + $0x8] sm:$0xff]
    %v107 = vld [vmem:[%s2] sm:$0x1]
    %v109 = vlaneseq
    %v110 = vshrl.u32 %v109, 7
    %v111 = vsub.s32 0, %v110
    %v112 = vrot.slane %v107, %v111
    %vm114 = vcmask 130048
    %v116 = vsel %vm114, %v89, 0
    %v119 = vsel %vm114, %v90, 0
    %v122 = vsel %vm114, %v91, 0
    %v125 = vsel %vm114, %v92, 0
    %v128 = vsel %vm114, %v93, 0
    %v131 = vsel %vm114, %v94, 0
    %v134 = vsel %vm114, %v95, 0
    %v137 = vsel %vm114, %v96, 0
    %v140 = vsel %vm114, %v97, 0
    %v143 = vsel %vm114, %v98, 0
    %v146 = vsel %vm114, %v99, 0
    %v149 = vsel %vm114, %v100, 0
    %v152 = vsel %vm114, %v101, 0
    %v155 = vsel %vm114, %v102, 0
    %v158 = vsel %vm114, %v103, 0
    %v161 = vsel %vm114, %v104, 0
    %163 = vmatprep.subr.mxu0 0.0
    %164 = vmatpush1.msra.mxu0 %v105
    %165 = vmatprep.subr.mxu0 0.0
    %166 = vmatpush1.msra.mxu0 %v106
    %167 = vmatprep.subr.mxu0 0.0
    %168 = vmatpush1.msra.mxu0 0.0
    %169 = vmatprep.subr.mxu0 0.0
    %170 = vmatpush1.msra.mxu0 0.0
    %171 = vmatprep.subr.mxu0 0.0
    %172 = vmatpush1.msra.mxu0 0.0
    %173 = vmatprep.subr.mxu0 0.0
    %174 = vmatpush1.msra.mxu0 0.0
    %175 = vmatprep.subr.mxu0 0.0
    %176 = vmatpush1.msra.mxu0 0.0
    %177 = vmatprep.subr.mxu0 0.0
    %178 = vmatpush1.msra.mxu0 0.0
    %179 = vmatprep.subr.mxu0 0.0
    %180 = vmatpush1.msra.mxu0 0.0
    %181 = vmatprep.subr.mxu0 0.0
    %182 = vmatpush1.msra.mxu0 0.0
    %183 = vmatprep.subr.mxu0 0.0
    %184 = vmatpush1.msra.mxu0 0.0
    %185 = vmatprep.subr.mxu0 0.0
    %186 = vmatpush1.msra.mxu0 0.0
    %187 = vmatprep.subr.mxu0 0.0
    %188 = vmatpush1.msra.mxu0 0.0
    %189 = vmatprep.subr.mxu0 0.0
    %190 = vmatpush1.msra.mxu0 0.0
    %191 = vmatprep.subr.mxu0 0.0
    %192 = vmatpush1.msra.mxu0 0.0
    %193 = vmatprep.subr.mxu0 0.0
    %194 = vmatpush1.msra.mxu0 0.0
    %195 = vmatprep.subr.mxu0 0.0
    %196 = vmatpush1.msra.mxu0 0.0
    %197 = vmatprep.subr.mxu0 0.0
    %198 = vmatpush1.msra.mxu0 0.0
    %199 = vmatprep.subr.mxu0 0.0
    %200 = vmatpush1.msra.mxu0 0.0
    %201 = vmatprep.subr.mxu0 0.0
    %202 = vmatpush1.msra.mxu0 0.0
    %203 = vmatprep.subr.mxu0 0.0
    %204 = vmatpush1.msra.mxu0 0.0
    %205 = vmatprep.subr.mxu0 0.0
    %206 = vmatpush1.msra.mxu0 0.0
    %207 = vmatprep.subr.mxu0 0.0
    %208 = vmatpush1.msra.mxu0 0.0
    %209 = vmatprep.subr.mxu0 0.0
    %210 = vmatpush1.msra.mxu0 0.0
    %211 = vmatprep.subr.mxu0 0.0
    %212 = vmatpush1.msra.mxu0 0.0
    %213 = vmatprep.subr.mxu0 0.0
    %214 = vmatpush1.msra.mxu0 0.0
    %215 = vmatprep.subr.mxu0 0.0
    %216 = vmatpush1.msra.mxu0 0.0
    %217 = vmatprep.subr.mxu0 0.0
    %218 = vmatpush1.msra.mxu0 0.0
    %219 = vmatprep.subr.mxu0 0.0
    %220 = vmatpush1.msra.mxu0 0.0
    %221 = vmatprep.subr.mxu0 0.0
    %222 = vmatpush1.msra.mxu0 0.0
    %223 = vmatprep.subr.mxu0 0.0
    %224 = vmatpush1.msra.mxu0 0.0
    %225 = vmatprep.subr.mxu0 0.0
    %226 = vmatpush1.msra.mxu0 0.0
    %227 = vmatprep.mubr.f32.mxu0 0.0
    %228 = vmatmul.mubr.f32.gmra.mrb[0].mxu0 %v116
    %v229 = vpop.f32.mrb[0].mxu0
    %v230 = vadd.f32 %v112, %v229
    %v231 = vpop.f32.mrb[0].mxu0
    %232 = vmatprep.mubr.f32.mxu0 0.0
    %233 = vmatmul.mubr.f32.gmra.mrb[0].mxu0 %v119
    %v234 = vpop.f32.mrb[0].mxu0
    %v235 = vadd.f32 %v112, %v234
    %v236 = vpop.f32.mrb[0].mxu0
    %237 = vmatprep.mubr.f32.mxu0 0.0
    %238 = vmatmul.mubr.f32.gmra.mrb[0].mxu0 %v122
    %v239 = vpop.f32.mrb[0].mxu0
    %v240 = vadd.f32 %v112, %v239
    %v241 = vpop.f32.mrb[0].mxu0
    %242 = vmatprep.mubr.f32.mxu0 0.0
    %243 = vmatmul.mubr.f32.gmra.mrb[0].mxu0 %v125
    %v244 = vpop.f32.mrb[0].mxu0
    %v245 = vadd.f32 %v112, %v244
    %v246 = vpop.f32.mrb[0].mxu0
    %247 = vmatprep.mubr.f32.mxu0 0.0
    %248 = vmatmul.mubr.f32.gmra.mrb[0].mxu0 %v128
    %v249 = vpop.f32.mrb[0].mxu0
    %v250 = vadd.f32 %v112, %v249
    %v251 = vpop.f32.mrb[0].mxu0
    %252 = vmatprep.mubr.f32.mxu0 0.0
    %253 = vmatmul.mubr.f32.gmra.mrb[0].mxu0 %v131
    %v254 = vpop.f32.mrb[0].mxu0
    %v255 = vadd.f32 %v112, %v254
    %v256 = vpop.f32.mrb[0].mxu0
    %257 = vmatprep.mubr.f32.mxu0 0.0
    %258 = vmatmul.mubr.f32.gmra.mrb[0].mxu0 %v134
    %v259 = vpop.f32.mrb[0].mxu0
    %v260 = vadd.f32 %v112, %v259
    %v261 = vpop.f32.mrb[0].mxu0
    %262 = vmatprep.mubr.f32.mxu0 0.0
    %263 = vmatmul.mubr.f32.gmra.mrb[0].mxu0 %v137
    %v264 = vpop.f32.mrb[0].mxu0
    %v265 = vadd.f32 %v112, %v264
    %v266 = vpop.f32.mrb[0].mxu0
    %267 = vmatprep.mubr.f32.mxu0 0.0
    %268 = vmatmul.mubr.f32.gmra.mrb[0].mxu0 %v140
    %v269 = vpop.f32.mrb[0].mxu0
    %v270 = vadd.f32 %v112, %v269
    %v271 = vpop.f32.mrb[0].mxu0
    %272 = vmatprep.mubr.f32.mxu0 0.0
    %273 = vmatmul.mubr.f32.gmra.mrb[0].mxu0 %v143
    %v274 = vpop.f32.mrb[0].mxu0
    %v275 = vadd.f32 %v112, %v274
    %v276 = vpop.f32.mrb[0].mxu0
    %277 = vmatprep.mubr.f32.mxu0 0.0
    %278 = vmatmul.mubr.f32.gmra.mrb[0].mxu0 %v146
    %v279 = vpop.f32.mrb[0].mxu0
    %v280 = vadd.f32 %v112, %v279
    %v281 = vpop.f32.mrb[0].mxu0
    %282 = vmatprep.mubr.f32.mxu0 0.0
    %283 = vmatmul.mubr.f32.gmra.mrb[0].mxu0 %v149
    %v284 = vpop.f32.mrb[0].mxu0
    %v285 = vadd.f32 %v112, %v284
    %v286 = vpop.f32.mrb[0].mxu0
    %287 = vmatprep.mubr.f32.mxu0 0.0
    %288 = vmatmul.mubr.f32.gmra.mrb[0].mxu0 %v152
    %v289 = vpop.f32.mrb[0].mxu0
    %v290 = vadd.f32 %v112, %v289
    %v291 = vpop.f32.mrb[0].mxu0
    %292 = vmatprep.mubr.f32.mxu0 0.0
    %293 = vmatmul.mubr.f32.gmra.mrb[0].mxu0 %v155
    %v294 = vpop.f32.mrb[0].mxu0
    %v295 = vadd.f32 %v112, %v294
    %v296 = vpop.f32.mrb[0].mxu0
    %297 = vmatprep.mubr.f32.mxu0 0.0
    %298 = vmatmul.mubr.f32.gmra.mrb[0].mxu0 %v158
    %v299 = vpop.f32.mrb[0].mxu0
    %v300 = vadd.f32 %v112, %v299
    %v301 = vpop.f32.mrb[0].mxu0
    %302 = vmatprep.mubr.f32.mxu0 0.0
    %303 = vmatmul.mubr.f32.gmra.mrb[0].mxu0 %v161
    %v304 = vpop.f32.mrb[0].mxu0
    %v305 = vadd.f32 %v112, %v304
    %v306 = vpop.f32.mrb[0].mxu0
    %307 = vdwg.mxu0
    %v308 = vmul.f32 %v230, 0.2
    %v309 = vmul.f32 %v235, 0.2
    %v310 = vmul.f32 %v240, 0.2
    %v311 = vmul.f32 %v245, 0.2
    %v312 = vmul.f32 %v250, 0.2
    %v313 = vmul.f32 %v255, 0.2
    %v314 = vmul.f32 %v260, 0.2
    %v315 = vmul.f32 %v265, 0.2
    %v316 = vmul.f32 %v270, 0.2
    %v317 = vmul.f32 %v275, 0.2
    %v318 = vmul.f32 %v280, 0.2
    %v319 = vmul.f32 %v285, 0.2
    %v320 = vmul.f32 %v290, 0.2
    %v321 = vmul.f32 %v295, 0.2
    %v322 = vmul.f32 %v300, 0.2
    %v323 = vmul.f32 %v305, 0.2
    %v324 = vmax.f32 %v230, %v308
    %v325 = vmax.f32 %v235, %v309
    %v326 = vmax.f32 %v240, %v310
    %v327 = vmax.f32 %v245, %v311
    %v328 = vmax.f32 %v250, %v312
    %v329 = vmax.f32 %v255, %v313
    %v330 = vmax.f32 %v260, %v314
    %v331 = vmax.f32 %v265, %v315
    %v332 = vmax.f32 %v270, %v316
    %v333 = vmax.f32 %v275, %v317
    %v334 = vmax.f32 %v280, %v318
    %v335 = vmax.f32 %v285, %v319
    %v336 = vmax.f32 %v290, %v320
    %v337 = vmax.f32 %v295, %v321
    %v338 = vmax.f32 %v300, %v322
    %v339 = vmax.f32 %v305, %v323
    %v340 = vld [vmem:[#allocation7] sm:$0xff]
    %v341 = vld [vmem:[#allocation7 + $0x8] sm:$0xff]
    %v342 = vld [vmem:[#allocation7 + $0x10] sm:$0xff]
    %v343 = vld [vmem:[#allocation7 + $0x18] sm:$0xff]
    %v344 = vld [vmem:[%s4] sm:$0x1]
    %v346 = vlaneseq
    %v347 = vshrl.u32 %v346, 7
    %v348 = vsub.s32 0, %v347
    %v349 = vrot.slane %v344, %v348
    %vm351 = vcmask 261120
    %v353 = vsel %vm351, %v324, 0
    %v356 = vsel %vm351, %v325, 0
    %v359 = vsel %vm351, %v326, 0
    %v362 = vsel %vm351, %v327, 0
    %v365 = vsel %vm351, %v328, 0
    %v368 = vsel %vm351, %v329, 0
    %v371 = vsel %vm351, %v330, 0
    %v374 = vsel %vm351, %v331, 0
    %v377 = vsel %vm351, %v332, 0
    %v380 = vsel %vm351, %v333, 0
    %v383 = vsel %vm351, %v334, 0
    %v386 = vsel %vm351, %v335, 0
    %v389 = vsel %vm351, %v336, 0
    %v392 = vsel %vm351, %v337, 0
    %v395 = vsel %vm351, %v338, 0
    %v398 = vsel %vm351, %v339, 0
    %400 = vmatprep.subr.mxu0 0.0
    %401 = vmatpush1.msra.mxu0 %v340
    %402 = vmatprep.subr.mxu0 0.0
    %403 = vmatpush1.msra.mxu0 %v341
    %404 = vmatprep.subr.mxu0 0.0
    %405 = vmatpush1.msra.mxu0 %v342
    %406 = vmatprep.subr.mxu0 0.0
    %407 = vmatpush1.msra.mxu0 %v343
    %408 = vmatprep.subr.mxu0 0.0
    %409 = vmatpush1.msra.mxu0 0.0
    %410 = vmatprep.subr.mxu0 0.0
    %411 = vmatpush1.msra.mxu0 0.0
    %412 = vmatprep.subr.mxu0 0.0
    %413 = vmatpush1.msra.mxu0 0.0
    %414 = vmatprep.subr.mxu0 0.0
    %415 = vmatpush1.msra.mxu0 0.0
    %416 = vmatprep.subr.mxu0 0.0
    %417 = vmatpush1.msra.mxu0 0.0
    %418 = vmatprep.subr.mxu0 0.0
    %419 = vmatpush1.msra.mxu0 0.0
    %420 = vmatprep.subr.mxu0 0.0
    %421 = vmatpush1.msra.mxu0 0.0
    %422 = vmatprep.subr.mxu0 0.0
    %423 = vmatpush1.msra.mxu0 0.0
    %424 = vmatprep.subr.mxu0 0.0
    %425 = vmatpush1.msra.mxu0 0.0
    %426 = vmatprep.subr.mxu0 0.0
    %427 = vmatpush1.msra.mxu0 0.0
    %428 = vmatprep.subr.mxu0 0.0
    %429 = vmatpush1.msra.mxu0 0.0
    %430 = vmatprep.subr.mxu0 0.0
    %431 = vmatpush1.msra.mxu0 0.0
    %432 = vmatprep.subr.mxu0 0.0
    %433 = vmatpush1.msra.mxu0 0.0
    %434 = vmatprep.subr.mxu0 0.0
    %435 = vmatpush1.msra.mxu0 0.0
    %436 = vmatprep.subr.mxu0 0.0
    %437 = vmatpush1.msra.mxu0 0.0
    %438 = vmatprep.subr.mxu0 0.0
    %439 = vmatpush1.msra.mxu0 0.0
    %440 = vmatprep.subr.mxu0 0.0
    %441 = vmatpush1.msra.mxu0 0.0
    %442 = vmatprep.subr.mxu0 0.0
    %443 = vmatpush1.msra.mxu0 0.0
    %444 = vmatprep.subr.mxu0 0.0
    %445 = vmatpush1.msra.mxu0 0.0
    %446 = vmatprep.subr.mxu0 0.0
    %447 = vmatpush1.msra.mxu0 0.0
    %448 = vmatprep.subr.mxu0 0.0
    %449 = vmatpush1.msra.mxu0 0.0
    %450 = vmatprep.subr.mxu0 0.0
    %451 = vmatpush1.msra.mxu0 0.0
    %452 = vmatprep.subr.mxu0 0.0
    %453 = vmatpush1.msra.mxu0 0.0
    %454 = vmatprep.subr.mxu0 0.0
    %455 = vmatpush1.msra.mxu0 0.0
    %456 = vmatprep.subr.mxu0 0.0
    %457 = vmatpush1.msra.mxu0 0.0
    %458 = vmatprep.subr.mxu0 0.0
    %459 = vmatpush1.msra.mxu0 0.0
    %460 = vmatprep.subr.mxu0 0.0
    %461 = vmatpush1.msra.mxu0 0.0
    %462 = vmatprep.subr.mxu0 0.0
    %463 = vmatpush1.msra.mxu0 0.0
    %464 = vmatprep.mubr.f32.mxu0 0.0
    %465 = vmatmul.mubr.f32.gmra.mrb[0].mxu0 %v353
    %v466 = vpop.f32.mrb[0].mxu0
    %v467 = vadd.f32 %v349, %v466
    %v468 = vpop.f32.mrb[0].mxu0
    %469 = vmatprep.mubr.f32.mxu0 0.0
    %470 = vmatmul.mubr.f32.gmra.mrb[0].mxu0 %v356
    %v471 = vpop.f32.mrb[0].mxu0
    %v472 = vadd.f32 %v349, %v471
    %v473 = vpop.f32.mrb[0].mxu0
    %474 = vmatprep.mubr.f32.mxu0 0.0
    %475 = vmatmul.mubr.f32.gmra.mrb[0].mxu0 %v359
    %v476 = vpop.f32.mrb[0].mxu0
    %v477 = vadd.f32 %v349, %v476
    %v478 = vpop.f32.mrb[0].mxu0
    %479 = vmatprep.mubr.f32.mxu0 0.0
    %480 = vmatmul.mubr.f32.gmra.mrb[0].mxu0 %v362
    %v481 = vpop.f32.mrb[0].mxu0
    %v482 = vadd.f32 %v349, %v481
    %v483 = vpop.f32.mrb[0].mxu0
    %484 = vmatprep.mubr.f32.mxu0 0.0
    %485 = vmatmul.mubr.f32.gmra.mrb[0].mxu0 %v365
    %v486 = vpop.f32.mrb[0].mxu0
    %v487 = vadd.f32 %v349, %v486
    %v488 = vpop.f32.mrb[0].mxu0
    %489 = vmatprep.mubr.f32.mxu0 0.0
    %490 = vmatmul.mubr.f32.gmra.mrb[0].mxu0 %v368
    %v491 = vpop.f32.mrb[0].mxu0
    %v492 = vadd.f32 %v349, %v491
    %v493 = vpop.f32.mrb[0].mxu0
    %494 = vmatprep.mubr.f32.mxu0 0.0
    %495 = vmatmul.mubr.f32.gmra.mrb[0].mxu0 %v371
    %v496 = vpop.f32.mrb[0].mxu0
    %v497 = vadd.f32 %v349, %v496
    %v498 = vpop.f32.mrb[0].mxu0
    %499 = vmatprep.mubr.f32.mxu0 0.0
    %500 = vmatmul.mubr.f32.gmra.mrb[0].mxu0 %v374
    %v501 = vpop.f32.mrb[0].mxu0
    %v502 = vadd.f32 %v349, %v501
    %v503 = vpop.f32.mrb[0].mxu0
    %504 = vmatprep.mubr.f32.mxu0 0.0
    %505 = vmatmul.mubr.f32.gmra.mrb[0].mxu0 %v377
    %v506 = vpop.f32.mrb[0].mxu0
    %v507 = vadd.f32 %v349, %v506
    %v508 = vpop.f32.mrb[0].mxu0
    %509 = vmatprep.mubr.f32.mxu0 0.0
    %510 = vmatmul.mubr.f32.gmra.mrb[0].mxu0 %v380
    %v511 = vpop.f32.mrb[0].mxu0
    %v512 = vadd.f32 %v349, %v511
    %v513 = vpop.f32.mrb[0].mxu0
    %514 = vmatprep.mubr.f32.mxu0 0.0
    %515 = vmatmul.mubr.f32.gmra.mrb[0].mxu0 %v383
    %v516 = vpop.f32.mrb[0].mxu0
    %v517 = vadd.f32 %v349, %v516
    %v518 = vpop.f32.mrb[0].mxu0
    %519 = vmatprep.mubr.f32.mxu0 0.0
    %520 = vmatmul.mubr.f32.gmra.mrb[0].mxu0 %v386
    %v521 = vpop.f32.mrb[0].mxu0
    %v522 = vadd.f32 %v349, %v521
    %v523 = vpop.f32.mrb[0].mxu0
    %524 = vmatprep.mubr.f32.mxu0 0.0
    %525 = vmatmul.mubr.f32.gmra.mrb[0].mxu0 %v389
    %v526 = vpop.f32.mrb[0].mxu0
    %v527 = vadd.f32 %v349, %v526
    %v528 = vpop.f32.mrb[0].mxu0
    %529 = vmatprep.mubr.f32.mxu0 0.0
    %530 = vmatmul.mubr.f32.gmra.mrb[0].mxu0 %v392
    %v531 = vpop.f32.mrb[0].mxu0
    %v532 = vadd.f32 %v349, %v531
    %v533 = vpop.f32.mrb[0].mxu0
    %534 = vmatprep.mubr.f32.mxu0 0.0
    %535 = vmatmul.mubr.f32.gmra.mrb[0].mxu0 %v395
    %v536 = vpop.f32.mrb[0].mxu0
    %v537 = vadd.f32 %v349, %v536
    %v538 = vpop.f32.mrb[0].mxu0
    %539 = vmatprep.mubr.f32.mxu0 0.0
    %540 = vmatmul.mubr.f32.gmra.mrb[0].mxu0 %v398
    %v541 = vpop.f32.mrb[0].mxu0
    %v542 = vadd.f32 %v349, %v541
    %v543 = vpop.f32.mrb[0].mxu0
    %544 = vdwg.mxu0
    %v545 = vmul.f32 %v467, 0.2
    %v546 = vmul.f32 %v472, 0.2
    %v547 = vmul.f32 %v477, 0.2
    %v548 = vmul.f32 %v482, 0.2
    %v549 = vmul.f32 %v487, 0.2
    %v550 = vmul.f32 %v492, 0.2
    %v551 = vmul.f32 %v497, 0.2
    %v552 = vmul.f32 %v502, 0.2
    %v553 = vmul.f32 %v507, 0.2
    %v554 = vmul.f32 %v512, 0.2
    %v555 = vmul.f32 %v517, 0.2
    %v556 = vmul.f32 %v522, 0.2
    %v557 = vmul.f32 %v527, 0.2
    %v558 = vmul.f32 %v532, 0.2
    %v559 = vmul.f32 %v537, 0.2
    %v560 = vmul.f32 %v542, 0.2
    %v561 = vmax.f32 %v467, %v545
    %v562 = vmax.f32 %v472, %v546
    %v563 = vmax.f32 %v477, %v547
    %v564 = vmax.f32 %v482, %v548
    %v565 = vmax.f32 %v487, %v549
    %v566 = vmax.f32 %v492, %v550
    %v567 = vmax.f32 %v497, %v551
    %v568 = vmax.f32 %v502, %v552
    %v569 = vmax.f32 %v507, %v553
    %v570 = vmax.f32 %v512, %v554
    %v571 = vmax.f32 %v517, %v555
    %v572 = vmax.f32 %v522, %v556
    %v573 = vmax.f32 %v527, %v557
    %v574 = vmax.f32 %v532, %v558
    %v575 = vmax.f32 %v537, %v559
    %v576 = vmax.f32 %v542, %v560
    %v577 = vld [vmem:[#allocation8] sm:$0xff]
    %v578 = vld [vmem:[#allocation8 + $0x8] sm:$0xff]
    %v579 = vld [vmem:[#allocation8 + $0x10] sm:$0xff]
    %v580 = vld [vmem:[#allocation8 + $0x18] sm:$0xff]
    %v581 = vld [vmem:[%s6] sm:$0x1]
    %v583 = vlaneseq
    %v584 = vshrl.u32 %v583, 7
    %v585 = vsub.s32 0, %v584
    %v586 = vrot.slane %v581, %v585
    %v589 = vsel %vm351, %v561, 0
    %v592 = vsel %vm351, %v562, 0
    %v595 = vsel %vm351, %v563, 0
    %v598 = vsel %vm351, %v564, 0
    %v601 = vsel %vm351, %v565, 0
    %v604 = vsel %vm351, %v566, 0
    %v607 = vsel %vm351, %v567, 0
    %v610 = vsel %vm351, %v568, 0
    %v613 = vsel %vm351, %v569, 0
    %v616 = vsel %vm351, %v570, 0
    %v619 = vsel %vm351, %v571, 0
    %v622 = vsel %vm351, %v572, 0
    %v625 = vsel %vm351, %v573, 0
    %v628 = vsel %vm351, %v574, 0
    %v631 = vsel %vm351, %v575, 0
    %v634 = vsel %vm351, %v576, 0
    %636 = vmatprep.subr.mxu0 0.0
    %637 = vmatpush1.msra.mxu0 %v577
    %638 = vmatprep.subr.mxu0 0.0
    %639 = vmatpush1.msra.mxu0 %v578
    %640 = vmatprep.subr.mxu0 0.0
    %641 = vmatpush1.msra.mxu0 %v579
    %642 = vmatprep.subr.mxu0 0.0
    %643 = vmatpush1.msra.mxu0 %v580
    %644 = vmatprep.subr.mxu0 0.0
    %645 = vmatpush1.msra.mxu0 0.0
    %646 = vmatprep.subr.mxu0 0.0
    %647 = vmatpush1.msra.mxu0 0.0
    %648 = vmatprep.subr.mxu0 0.0
    %649 = vmatpush1.msra.mxu0 0.0
    %650 = vmatprep.subr.mxu0 0.0
    %651 = vmatpush1.msra.mxu0 0.0
    %652 = vmatprep.subr.mxu0 0.0
    %653 = vmatpush1.msra.mxu0 0.0
    %654 = vmatprep.subr.mxu0 0.0
    %655 = vmatpush1.msra.mxu0 0.0
    %656 = vmatprep.subr.mxu0 0.0
    %657 = vmatpush1.msra.mxu0 0.0
    %658 = vmatprep.subr.mxu0 0.0
    %659 = vmatpush1.msra.mxu0 0.0
    %660 = vmatprep.subr.mxu0 0.0
    %661 = vmatpush1.msra.mxu0 0.0
    %662 = vmatprep.subr.mxu0 0.0
    %663 = vmatpush1.msra.mxu0 0.0
    %664 = vmatprep.subr.mxu0 0.0
    %665 = vmatpush1.msra.mxu0 0.0
    %666 = vmatprep.subr.mxu0 0.0
    %667 = vmatpush1.msra.mxu0 0.0
    %668 = vmatprep.subr.mxu0 0.0
    %669 = vmatpush1.msra.mxu0 0.0
    %670 = vmatprep.subr.mxu0 0.0
    %671 = vmatpush1.msra.mxu0 0.0
    %672 = vmatprep.subr.mxu0 0.0
    %673 = vmatpush1.msra.mxu0 0.0
    %674 = vmatprep.subr.mxu0 0.0
    %675 = vmatpush1.msra.mxu0 0.0
    %676 = vmatprep.subr.mxu0 0.0
    %677 = vmatpush1.msra.mxu0 0.0
    %678 = vmatprep.subr.mxu0 0.0
    %679 = vmatpush1.msra.mxu0 0.0
    %680 = vmatprep.subr.mxu0 0.0
    %681 = vmatpush1.msra.mxu0 0.0
    %682 = vmatprep.subr.mxu0 0.0
    %683 = vmatpush1.msra.mxu0 0.0
    %684 = vmatprep.subr.mxu0 0.0
    %685 = vmatpush1.msra.mxu0 0.0
    %686 = vmatprep.subr.mxu0 0.0
    %687 = vmatpush1.msra.mxu0 0.0
    %688 = vmatprep.subr.mxu0 0.0
    %689 = vmatpush1.msra.mxu0 0.0
    %690 = vmatprep.subr.mxu0 0.0
    %691 = vmatpush1.msra.mxu0 0.0
    %692 = vmatprep.subr.mxu0 0.0
    %693 = vmatpush1.msra.mxu0 0.0
    %694 = vmatprep.subr.mxu0 0.0
    %695 = vmatpush1.msra.mxu0 0.0
    %696 = vmatprep.subr.mxu0 0.0
    %697 = vmatpush1.msra.mxu0 0.0
    %698 = vmatprep.subr.mxu0 0.0
    %699 = vmatpush1.msra.mxu0 0.0
    %700 = vmatprep.mubr.f32.mxu0 0.0
    %701 = vmatmul.mubr.f32.gmra.mrb[0].mxu0 %v589
    %v702 = vpop.f32.mrb[0].mxu0
    %v703 = vadd.f32 %v586, %v702
    %v704 = vpop.f32.mrb[0].mxu0
    %705 = vmatprep.mubr.f32.mxu0 0.0
    %706 = vmatmul.mubr.f32.gmra.mrb[0].mxu0 %v592
    %v707 = vpop.f32.mrb[0].mxu0
    %v708 = vadd.f32 %v586, %v707
    %v709 = vpop.f32.mrb[0].mxu0
    %710 = vmatprep.mubr.f32.mxu0 0.0
    %711 = vmatmul.mubr.f32.gmra.mrb[0].mxu0 %v595
    %v712 = vpop.f32.mrb[0].mxu0
    %v713 = vadd.f32 %v586, %v712
    %v714 = vpop.f32.mrb[0].mxu0
    %715 = vmatprep.mubr.f32.mxu0 0.0
    %716 = vmatmul.mubr.f32.gmra.mrb[0].mxu0 %v598
    %v717 = vpop.f32.mrb[0].mxu0
    %v718 = vadd.f32 %v586, %v717
    %v719 = vpop.f32.mrb[0].mxu0
    %720 = vmatprep.mubr.f32.mxu0 0.0
    %721 = vmatmul.mubr.f32.gmra.mrb[0].mxu0 %v601
    %v722 = vpop.f32.mrb[0].mxu0
    %v723 = vadd.f32 %v586, %v722
    %v724 = vpop.f32.mrb[0].mxu0
    %725 = vmatprep.mubr.f32.mxu0 0.0
    %726 = vmatmul.mubr.f32.gmra.mrb[0].mxu0 %v604
    %v727 = vpop.f32.mrb[0].mxu0
    %v728 = vadd.f32 %v586, %v727
    %v729 = vpop.f32.mrb[0].mxu0
    %730 = vmatprep.mubr.f32.mxu0 0.0
    %731 = vmatmul.mubr.f32.gmra.mrb[0].mxu0 %v607
    %v732 = vpop.f32.mrb[0].mxu0
    %v733 = vadd.f32 %v586, %v732
    %v734 = vpop.f32.mrb[0].mxu0
    %735 = vmatprep.mubr.f32.mxu0 0.0
    %736 = vmatmul.mubr.f32.gmra.mrb[0].mxu0 %v610
    %v737 = vpop.f32.mrb[0].mxu0
    %v738 = vadd.f32 %v586, %v737
    %v739 = vpop.f32.mrb[0].mxu0
    %740 = vmatprep.mubr.f32.mxu0 0.0
    %741 = vmatmul.mubr.f32.gmra.mrb[0].mxu0 %v613
    %v742 = vpop.f32.mrb[0].mxu0
    %v743 = vadd.f32 %v586, %v742
    %v744 = vpop.f32.mrb[0].mxu0
    %745 = vmatprep.mubr.f32.mxu0 0.0
    %746 = vmatmul.mubr.f32.gmra.mrb[0].mxu0 %v616
    %v747 = vpop.f32.mrb[0].mxu0
    %v748 = vadd.f32 %v586, %v747
    %v749 = vpop.f32.mrb[0].mxu0
    %750 = vmatprep.mubr.f32.mxu0 0.0
    %751 = vmatmul.mubr.f32.gmra.mrb[0].mxu0 %v619
    %v752 = vpop.f32.mrb[0].mxu0
    %v753 = vadd.f32 %v586, %v752
    %v754 = vpop.f32.mrb[0].mxu0
    %755 = vmatprep.mubr.f32.mxu0 0.0
    %756 = vmatmul.mubr.f32.gmra.mrb[0].mxu0 %v622
    %v757 = vpop.f32.mrb[0].mxu0
    %v758 = vadd.f32 %v586, %v757
    %v759 = vpop.f32.mrb[0].mxu0
    %760 = vmatprep.mubr.f32.mxu0 0.0
    %761 = vmatmul.mubr.f32.gmra.mrb[0].mxu0 %v625
    %v762 = vpop.f32.mrb[0].mxu0
    %v763 = vadd.f32 %v586, %v762
    %v764 = vpop.f32.mrb[0].mxu0
    %765 = vmatprep.mubr.f32.mxu0 0.0
    %766 = vmatmul.mubr.f32.gmra.mrb[0].mxu0 %v628
    %v767 = vpop.f32.mrb[0].mxu0
    %v768 = vadd.f32 %v586, %v767
    %v769 = vpop.f32.mrb[0].mxu0
    %770 = vmatprep.mubr.f32.mxu0 0.0
    %771 = vmatmul.mubr.f32.gmra.mrb[0].mxu0 %v631
    %v772 = vpop.f32.mrb[0].mxu0
    %v773 = vadd.f32 %v586, %v772
    %v774 = vpop.f32.mrb[0].mxu0
    %775 = vmatprep.mubr.f32.mxu0 0.0
    %776 = vmatmul.mubr.f32.gmra.mrb[0].mxu0 %v634
    %v777 = vpop.f32.mrb[0].mxu0
    %v778 = vadd.f32 %v586, %v777
    %v779 = vpop.f32.mrb[0].mxu0
    %780 = vdwg.mxu0
    %v781 = vmul.f32 %v703, 0.2
    %v782 = vmul.f32 %v708, 0.2
    %v783 = vmul.f32 %v713, 0.2
    %v784 = vmul.f32 %v718, 0.2
    %v785 = vmul.f32 %v723, 0.2
    %v786 = vmul.f32 %v728, 0.2
    %v787 = vmul.f32 %v733, 0.2
    %v788 = vmul.f32 %v738, 0.2
    %v789 = vmul.f32 %v743, 0.2
    %v790 = vmul.f32 %v748, 0.2
    %v791 = vmul.f32 %v753, 0.2
    %v792 = vmul.f32 %v758, 0.2
    %v793 = vmul.f32 %v763, 0.2
    %v794 = vmul.f32 %v768, 0.2
    %v795 = vmul.f32 %v773, 0.2
    %v796 = vmul.f32 %v778, 0.2
    %v797 = vmax.f32 %v703, %v781
    %v798 = vmax.f32 %v708, %v782
    %v799 = vmax.f32 %v713, %v783
    %v800 = vmax.f32 %v718, %v784
    %v801 = vmax.f32 %v723, %v785
    %v802 = vmax.f32 %v728, %v786
    %v803 = vmax.f32 %v733, %v787
    %v804 = vmax.f32 %v738, %v788
    %v805 = vmax.f32 %v743, %v789
    %v806 = vmax.f32 %v748, %v790
    %v807 = vmax.f32 %v753, %v791
    %v808 = vmax.f32 %v758, %v792
    %v809 = vmax.f32 %v763, %v793
    %v810 = vmax.f32 %v768, %v794
    %v811 = vmax.f32 %v773, %v795
    %v812 = vmax.f32 %v778, %v796
    %v813 = vld [vmem:[%s7] sm:$0x1]
    %v815 = vlaneseq
    %v816 = vshrl.u32 %v815, 7
    %v817 = vsub.s32 0, %v816
    %v818 = vrot.slane %v813, %v817
    %v820 = vmul.f32 %v797, %v818
    %v821 = vmul.f32 %v798, %v818
    %v822 = vmul.f32 %v799, %v818
    %v823 = vmul.f32 %v800, %v818
    %v824 = vmul.f32 %v801, %v818
    %v825 = vmul.f32 %v802, %v818
    %v826 = vmul.f32 %v803, %v818
    %v827 = vmul.f32 %v804, %v818
    %v828 = vmul.f32 %v805, %v818
    %v829 = vmul.f32 %v806, %v818
    %v830 = vmul.f32 %v807, %v818
    %v831 = vmul.f32 %v808, %v818
    %v832 = vmul.f32 %v809, %v818
    %v833 = vmul.f32 %v810, %v818
    %v834 = vmul.f32 %v811, %v818
    %v835 = vmul.f32 %v812, %v818
    %v836 = vsel %vm351, %v820, 0.0
    %837 = vadd.xlane.f32.xlu0 %v836
    %v838 = vpop.xlane.xlu0 %837
    %v839 = vsel %vm351, %v821, 0.0
    %840 = vadd.xlane.f32.xlu0 %v839
    %v841 = vpop.xlane.xlu0 %840
    %v842 = vsel %vm351, %v822, 0.0
    %843 = vadd.xlane.f32.xlu0 %v842
    %v844 = vpop.xlane.xlu0 %843
    %v845 = vsel %vm351, %v823, 0.0
    %846 = vadd.xlane.f32.xlu0 %v845
    %v847 = vpop.xlane.xlu0 %846
    %v848 = vsel %vm351, %v824, 0.0
    %849 = vadd.xlane.f32.xlu0 %v848
    %v850 = vpop.xlane.xlu0 %849
    %v851 = vsel %vm351, %v825, 0.0
    %852 = vadd.xlane.f32.xlu0 %v851
    %v853 = vpop.xlane.xlu0 %852
    %v854 = vsel %vm351, %v826, 0.0
    %855 = vadd.xlane.f32.xlu0 %v854
    %v856 = vpop.xlane.xlu0 %855
    %v857 = vsel %vm351, %v827, 0.0
    %858 = vadd.xlane.f32.xlu0 %v857
    %v859 = vpop.xlane.xlu0 %858
    %v860 = vsel %vm351, %v828, 0.0
    %861 = vadd.xlane.f32.xlu0 %v860
    %v862 = vpop.xlane.xlu0 %861
    %v863 = vsel %vm351, %v829, 0.0
    %864 = vadd.xlane.f32.xlu0 %v863
    %v865 = vpop.xlane.xlu0 %864
    %v866 = vsel %vm351, %v830, 0.0
    %867 = vadd.xlane.f32.xlu0 %v866
    %v868 = vpop.xlane.xlu0 %867
    %v869 = vsel %vm351, %v831, 0.0
    %870 = vadd.xlane.f32.xlu0 %v869
    %v871 = vpop.xlane.xlu0 %870
    %v872 = vsel %vm351, %v832, 0.0
    %873 = vadd.xlane.f32.xlu0 %v872
    %v874 = vpop.xlane.xlu0 %873
    %v875 = vsel %vm351, %v833, 0.0
    %876 = vadd.xlane.f32.xlu0 %v875
    %v877 = vpop.xlane.xlu0 %876
    %v878 = vsel %vm351, %v834, 0.0
    %879 = vadd.xlane.f32.xlu0 %v878
    %v880 = vpop.xlane.xlu0 %879
    %v881 = vsel %vm351, %v835, 0.0
    %882 = vadd.xlane.f32.xlu0 %v881
    %v883 = vpop.xlane.xlu0 %882
    %v884 = vld [vmem:[#allocation2] sm:$0x1]
    %v886 = vlaneseq
    %v887 = vshrl.u32 %v886, 7
    %v888 = vsub.s32 0, %v887
    %v889 = vrot.slane %v884, %v888
    %v891 = vadd.f32 %v838, %v889
    %v892 = vadd.f32 %v841, %v889
    %v893 = vadd.f32 %v844, %v889
    %v894 = vadd.f32 %v847, %v889
    %v895 = vadd.f32 %v850, %v889
    %v896 = vadd.f32 %v853, %v889
    %v897 = vadd.f32 %v856, %v889
    %v898 = vadd.f32 %v859, %v889
    %v899 = vadd.f32 %v862, %v889
    %v900 = vadd.f32 %v865, %v889
    %v901 = vadd.f32 %v868, %v889
    %v902 = vadd.f32 %v871, %v889
    %v903 = vadd.f32 %v874, %v889
    %v904 = vadd.f32 %v877, %v889
    %v905 = vadd.f32 %v880, %v889
    %v906 = vadd.f32 %v883, %v889
    %v907 = vsub.f32 0.0, %v891
    %v908 = vsub.f32 0.0, %v892
    %v909 = vsub.f32 0.0, %v893
    %v910 = vsub.f32 0.0, %v894
    %v911 = vsub.f32 0.0, %v895
    %v912 = vsub.f32 0.0, %v896
    %v913 = vsub.f32 0.0, %v897
    %v914 = vsub.f32 0.0, %v898
    %v915 = vsub.f32 0.0, %v899
    %v916 = vsub.f32 0.0, %v900
    %v917 = vsub.f32 0.0, %v901
    %v918 = vsub.f32 0.0, %v902
    %v919 = vsub.f32 0.0, %v903
    %v920 = vsub.f32 0.0, %v904
    %v921 = vsub.f32 0.0, %v905
    %v922 = vsub.f32 0.0, %v906
    %vm923 = vcmask 7168
    %924 = vst.msk [vmem:[#allocation10] sm:$0xff] %vm923, %v907
    %925 = vst.msk [vmem:[#allocation10 + $0x8] sm:$0xff] %vm923, %v908
    %926 = vst.msk [vmem:[#allocation10 + $0x10] sm:$0xff] %vm923, %v909
    %927 = vst.msk [vmem:[#allocation10 + $0x18] sm:$0xff] %vm923, %v910
    %928 = vst.msk [vmem:[#allocation10 + $0x20] sm:$0xff] %vm923, %v911
    %929 = vst.msk [vmem:[#allocation10 + $0x28] sm:$0xff] %vm923, %v912
    %930 = vst.msk [vmem:[#allocation10 + $0x30] sm:$0xff] %vm923, %v913
    %931 = vst.msk [vmem:[#allocation10 + $0x38] sm:$0xff] %vm923, %v914
    %932 = vst.msk [vmem:[#allocation10 + $0x40] sm:$0xff] %vm923, %v915
    %933 = vst.msk [vmem:[#allocation10 + $0x48] sm:$0xff] %vm923, %v916
    %934 = vst.msk [vmem:[#allocation10 + $0x50] sm:$0xff] %vm923, %v917
    %935 = vst.msk [vmem:[#allocation10 + $0x58] sm:$0xff] %vm923, %v918
    %936 = vst.msk [vmem:[#allocation10 + $0x60] sm:$0xff] %vm923, %v919
    %937 = vst.msk [vmem:[#allocation10 + $0x68] sm:$0xff] %vm923, %v920
    %938 = vst.msk [vmem:[#allocation10 + $0x70] sm:$0xff] %vm923, %v921
    %939 = vst.msk [vmem:[#allocation10 + $0x78] sm:$0xff] %vm923, %v922
    // Predicated region
    $region54: #{tpu_custom_call.1} parent=1 // pred_check
      _
    $region55: #{tpu_custom_call.1} parent=1 // pred_check_branch
      %941 = sbr.rel (0) target = $region57
    $region56: #{tpu_custom_call.1} parent=1 // pred_region
      // Predicated region
      $region58: #{tpu_custom_call.1} parent=56 // pred_check
        _
      $region59: #{tpu_custom_call.1} parent=56 // pred_check_branch
        %943 = sbr.rel (0) target = $region61
      $region60: #{tpu_custom_call.1} parent=56 // pred_region
        // Predicated region
        $region62: #{tpu_custom_call.1} parent=60 // pred_check
          _
        $region63: #{tpu_custom_call.1} parent=60 // pred_check_branch
          %945 = sbr.rel (0) target = $region65
        $region64: #{tpu_custom_call.1} parent=60 // pred_region
          // Predicated region
          $region77: #{tpu_custom_call.1} parent=64 // pred_check
            _
          $region78: #{tpu_custom_call.1} parent=64 // pred_check_branch
            %960 = sbr.rel (0) target = $region80
          $region79: #{tpu_custom_call.1} parent=64 // pred_region
            loop: start=0, step=1, limit=1
            $region81: #{tpu_custom_call.1} parent=79 // loop_pre_header
              _
            $region82: #{tpu_custom_call.1} parent=79 // loop_header
              %s962 = sphi 0, %s966
              %p963 = scmp.ge.s32.totalorder %s962, 1
              %s967 = sphi [#allocation10], [#allocation10]
              %s968 = sphi %s9, %s9
            $region83: #{tpu_custom_call.1} parent=79 // loop_header_branch
              %965 = sbr.rel (%p963) target = $region87
            $region84: #{tpu_custom_call.1} parent=79 // loop_body
              %v969 = vld [vmem:[%s967] sm:$0xff]
              %970 = vst [vmem:[%s968] sm:$0xff] %v969
            $region85: #{tpu_custom_call.1} parent=79 // loop_footer
              %s966 = sadd.s32 1, %s962
            $region86: #{tpu_custom_call.1} parent=79 // loop_footer_branch
              %961 = sbr.rel target = $region82
            $region87: #{tpu_custom_call.1} parent=79 // loop_exit
              _
          $region80: #{tpu_custom_call.1} parent=64 // pred_fallthru
            _
          // Predicated region
          $region88: #{tpu_custom_call.1} parent=64 // pred_check
            _
          $region89: #{tpu_custom_call.1} parent=64 // pred_check_branch
            %972 = sbr.rel target = $region91
          $region90: #{tpu_custom_call.1} parent=64 // pred_region
            _
          $region91: #{tpu_custom_call.1} parent=64 // pred_fallthru
            _
        $region65: #{tpu_custom_call.1} parent=60 // pred_fallthru
          _
        // Predicated region
        $region66: #{tpu_custom_call.1} parent=60 // pred_check
          _
        $region67: #{tpu_custom_call.1} parent=60 // pred_check_branch
          %947 = sbr.rel target = $region69
        $region68: #{tpu_custom_call.1} parent=60 // pred_region
          loop: start=0, step=1, limit=1
          $region70: #{tpu_custom_call.1} parent=68 // loop_pre_header
            _
          $region71: #{tpu_custom_call.1} parent=68 // loop_header
            %s950 = sphi 0, %s954
            %p951 = scmp.ge.s32.totalorder %s950, 1
            %s955 = sphi [#allocation10], [#allocation10]
            %s956 = sphi %s9, %s9
          $region72: #{tpu_custom_call.1} parent=68 // loop_header_branch
            %953 = sbr.rel (%p951) target = $region76
          $region73: #{tpu_custom_call.1} parent=68 // loop_body
            %v957 = vld [vmem:[%s955] sm:$0xff]
            %958 = vst [vmem:[%s956] sm:$0xff] %v957
          $region74: #{tpu_custom_call.1} parent=68 // loop_footer
            %s954 = sadd.s32 1, %s950
          $region75: #{tpu_custom_call.1} parent=68 // loop_footer_branch
            %949 = sbr.rel target = $region71
          $region76: #{tpu_custom_call.1} parent=68 // loop_exit
            _
        $region69: #{tpu_custom_call.1} parent=60 // pred_fallthru
          _
      $region61: #{tpu_custom_call.1} parent=56 // pred_fallthru
        _
      %973 = vnop
    $region57: #{tpu_custom_call.1} parent=1 // pred_fallthru
      _
    // Predicated region
    $region92: #{tpu_custom_call.1} parent=1 // pred_check
      _
    $region93: #{tpu_custom_call.1} parent=1 // pred_check_branch
      %975 = sbr.rel (0) target = $region95
    $region94: #{tpu_custom_call.1} parent=1 // pred_region
      _
    $region95: #{tpu_custom_call.1} parent=1 // pred_fallthru
      _
    %976 = vsyncpa [#allocation4], 1
    %977 = vsyncpa [#allocation6], 1
    %978 = vsyncpa [#allocation9], 1

</llo_original>
